<compile_context>
chip_gen: v6e
topology: v6e:2x2x1
jax: 0.10.0
libtpu: 0.0.40
codegen_flags: <defaults>
</compile_context>

<pallas_src>
import math

import jax
import jax.numpy as jnp
from jax.experimental import pallas as pl
from jax.experimental.pallas import tpu as pltpu

LOG_STD_BOUNDS = (-5.0, 2.0)
LANE = 128
SUBLANE = 8


def _round_up(x, m):
    return (x + m - 1) // m * m


# --------------------------------------------------------------------------
# Kernel
# --------------------------------------------------------------------------
def _actor_kernel(obs_ref,
                  w1_ref, b1_ref,
                  w2_ref, b2_ref,
                  wh_ref, bh_ref,
                  lo_ref, hi_ref,
                  out_ref):
    # Trunk layer 0: MXU matmul (bf16 inputs, f32 accumulate); bias/ReLU in f32.
    h = jnp.dot(obs_ref[...].astype(w1_ref.dtype), w1_ref[...],
                preferred_element_type=jnp.float32) + b1_ref[...]
    h = jnp.maximum(h, 0.0)

    # Trunk layer 1: Linear + ReLU.
    h = jnp.dot(h.astype(w2_ref.dtype), w2_ref[...],
                preferred_element_type=jnp.float32) + b2_ref[...]
    h = jnp.maximum(h, 0.0)

    # Fused heads: one [hidden, head_pad] matmul.
    #   lanes [0, A)   -> mu       (clamp bounds are -inf/+inf, i.e. no-op)
    #   lanes [A, 2A)  -> log_std  (clamped to LOG_STD_BOUNDS)
    y = jnp.dot(h.astype(wh_ref.dtype), wh_ref[...],
                preferred_element_type=jnp.float32) + bh_ref[...]
    out_ref[...] = jnp.clip(y, lo_ref[...], hi_ref[...]).astype(out_ref.dtype)


# --------------------------------------------------------------------------
# Host-side parameter packing (done once, outside the hot path)
# --------------------------------------------------------------------------
def pack_params(params, *, weight_dtype=jnp.bfloat16):
    """Pack PyTorch-layout params ([in,out] weights, [1,out] biases) for the kernel."""
    w1, b1 = params["w1"], params["b1"]
    w2, b2 = params["w2"], params["b2"]
    wmu, bmu = params["wmu"], params["bmu"]
    wls, bls = params["wls"], params["bls"]

    obs_dim, hidden_dim = w1.shape
    action_dim = wmu.shape[1]
    # Lane-dense fused head (128-wide is already a full MXU tile on v5e; keep
    # until action_dim > 64, then pad to 256 on v6e/v7x).
    head_pad = _round_up(max(2 * action_dim, LANE), LANE)

    wh = jnp.zeros((hidden_dim, head_pad), jnp.float32)
    wh = wh.at[:, :action_dim].set(wmu).at[:, action_dim:2 * action_dim].set(wls)
    bh = jnp.zeros((1, head_pad), jnp.float32)
    bh = bh.at[:, :action_dim].set(bmu[0]).at[:, action_dim:2 * action_dim].set(bls[0])

    # Per-lane clamp bounds: no-op on mu / padded lanes, LOG_STD_BOUNDS on log_std lanes.
    lo = jnp.full((1, head_pad), -jnp.inf, jnp.float32)
    lo = lo.at[:, action_dim:2 * action_dim].set(LOG_STD_BOUNDS[0])
    hi = jnp.full((1, head_pad), jnp.inf, jnp.float32)
    hi = hi.at[:, action_dim:2 * action_dim].set(LOG_STD_BOUNDS[1])

    return dict(
        w1=w1.astype(weight_dtype), b1=b1.astype(jnp.float32),
        w2=w2.astype(weight_dtype), b2=b2.astype(jnp.float32),
        wh=wh.astype(weight_dtype), bh=bh,
        lo=lo, hi=hi,
        obs_dim=obs_dim, hidden_dim=hidden_dim,
        action_dim=action_dim, head_pad=head_pad)


# --------------------------------------------------------------------------
# Forward wrapper
# --------------------------------------------------------------------------
def diag_gaussian_actor_forward(obs, packed, *, tile_b=2048):
    """obs: [B, obs_dim] f32. packed: output of pack_params. Returns (mu, log_std)."""
    B, obs_dim = obs.shape
    assert obs_dim == packed["obs_dim"]

    hidden_dim = packed["hidden_dim"]
    action_dim = packed["action_dim"]
    head_pad = packed["head_pad"]

    # Batch tiling (no per-call host copy of obs):
    #   * tile_b is a sublane multiple;
    #   * at least 2 batch tiles whenever B allows it -> "parallel" axis can
    #     shard across both v7x TensorCores (neutral on v5e/v6e);
    #   * ragged last tile handled by Pallas; rows beyond B are garbage and
    #     are sliced off below (never read otherwise).
    b_aligned = _round_up(max(B, 1), SUBLANE)
    tile_b = max(SUBLANE, min(tile_b, _round_up(pl.cdiv(b_aligned, 2), SUBLANE)))
    num_tiles = pl.cdiv(B, tile_b)
    b_out = num_tiles * tile_b

    w_bytes = packed["w1"].dtype.itemsize
    flops = 2 * b_out * (obs_dim * hidden_dim
                         + hidden_dim * hidden_dim
                         + hidden_dim * head_pad)
    bytes_accessed = (4 * B * obs_dim + 4 * b_out * head_pad
                      + w_bytes * (obs_dim * hidden_dim + hidden_dim * hidden_dim
                                   + hidden_dim * head_pad)
                      + 4 * (2 * hidden_dim + 3 * head_pad))

    out = pl.pallas_call(
        _actor_kernel,
        out_shape=jax.ShapeDtypeStruct((b_out, head_pad), jnp.float32),
        grid=(num_tiles,),
        in_specs=[
            pl.BlockSpec((tile_b, obs_dim), lambda i: (i, 0)),          # obs tile
            # Grid-invariant weights/biases (resident in VMEM across the grid).
            pl.BlockSpec((obs_dim, hidden_dim), lambda i: (0, 0)),      # W1
            pl.BlockSpec((1, hidden_dim), lambda i: (0, 0)),            # b1
            pl.BlockSpec((hidden_dim, hidden_dim), lambda i: (0, 0)),   # W2
            pl.BlockSpec((1, hidden_dim), lambda i: (0, 0)),            # b2
            pl.BlockSpec((hidden_dim, head_pad), lambda i: (0, 0)),     # fused head W
            pl.BlockSpec((1, head_pad), lambda i: (0, 0)),              # fused head b
            pl.BlockSpec((1, head_pad), lambda i: (0, 0)),              # clamp lo
            pl.BlockSpec((1, head_pad), lambda i: (0, 0)),              # clamp hi
        ],
        out_specs=pl.BlockSpec((tile_b, head_pad), lambda i: (i, 0)),
        compiler_params=pltpu.CompilerParams(
            dimension_semantics=("parallel",),
            vmem_limit_bytes=32 * 1024 * 1024,
        ),
        cost_estimate=pl.CostEstimate(
            flops=flops, transcendentals=0, bytes_accessed=bytes_accessed),
    )(obs,
      packed["w1"], packed["b1"],
      packed["w2"], packed["b2"],
      packed["wh"], packed["bh"],
      packed["lo"], packed["hi"])

    mu = out[:B, :action_dim]
    log_std = out[:B, action_dim:2 * action_dim]
    return mu, log_std


# --------------------------------------------------------------------------
# Parameter init (mimics PyTorch defaults) and plain-JAX reference
# --------------------------------------------------------------------------
def init_params(key, obs_dim, action_dim, hidden_dim):
    """Weights stored transposed ([in, out]); biases stored as [1, out]."""
    ks = jax.random.split(key, 8)

    def uniform(k, shape, bound):
        return jax.random.uniform(k, shape, jnp.float32, -bound, bound)

    bnd0 = 1.0 / math.sqrt(obs_dim)
    w1 = uniform(ks[0], (obs_dim, hidden_dim), bnd0)
    b1 = uniform(ks[1], (1, hidden_dim), bnd0)

    bnd1 = 1.0 / math.sqrt(hidden_dim)
    w2 = uniform(ks[2], (hidden_dim, hidden_dim), bnd1)
    b2 = uniform(ks[3], (1, hidden_dim), bnd1)

    xav = math.sqrt(6.0 / (hidden_dim + action_dim))
    wmu = uniform(ks[4], (hidden_dim, action_dim), xav)
    bmu = uniform(ks[5], (1, action_dim), bnd1)
    wls = uniform(ks[6], (hidden_dim, action_dim), xav)
    bls = uniform(ks[7], (1, action_dim), bnd1)

    return dict(w1=w1, b1=b1, w2=w2, b2=b2,
                wmu=wmu, bmu=bmu, wls=wls, bls=bls)


def reference_forward(obs, p):
    h = jnp.maximum(obs @ p["w1"] + p["b1"], 0.0)
    h = jnp.maximum(h @ p["w2"] + p["b2"], 0.0)
    mu = h @ p["wmu"] + p["bmu"]
    ls = jnp.clip(h @ p["wls"] + p["bls"], LOG_STD_BOUNDS[0], LOG_STD_BOUNDS[1])
    return mu, ls


if __name__ == "__main__":
    B, OBS_DIM, ACTION_DIM, HIDDEN_DIM = 8, 24, 6, 256

    key = jax.random.PRNGKey(0)
    k_obs, k_params = jax.random.split(key)

    obs = jax.random.normal(k_obs, (B, OBS_DIM), dtype=jnp.float32)
    params = init_params(k_params, OBS_DIM, ACTION_DIM, HIDDEN_DIM)
    mu_ref, ls_ref = reference_forward(obs, params)

    # --- f32 weight path: exact validation against the plain-JAX reference ---
    packed_f32 = pack_params(params, weight_dtype=jnp.float32)
    mu32, ls32 = diag_gaussian_actor_forward(obs, packed_f32)
    jax.block_until_ready((mu32, ls32))
    assert mu32.shape == (B, ACTION_DIM) and ls32.shape == (B, ACTION_DIM)
    assert jnp.allclose(mu32, mu_ref, atol=1e-5, rtol=1e-5)
    assert jnp.allclose(ls32, ls_ref, atol=1e-5, rtol=1e-5)

    # --- bf16 weight path (default; fast MXU path on v5e/v6e/v7x) ------------
    packed = pack_params(params)  # bf16 weights, f32 accumulate
    mu, log_std = diag_gaussian_actor_forward(obs, packed)
    jax.block_until_ready((mu, log_std))
    assert mu.shape == (B, ACTION_DIM) and log_std.shape == (B, ACTION_DIM)
    assert jnp.allclose(mu, mu_ref, atol=2e-2, rtol=2e-2)
    assert jnp.allclose(log_std, ls_ref, atol=2e-2, rtol=2e-2)
    assert float(log_std.min()) >= LOG_STD_BOUNDS[0] - 1e-6
    assert float(log_std.max()) <= LOG_STD_BOUNDS[1] + 1e-6

    # NOTE: at B=8 this is launch/pipeline-overhead bound; the bf16 / two-tile
    # wins only show up for B in the hundreds-to-thousands.
    print("KERNEL_OK")
</pallas_src>

<mosaic_0001>
module attributes {stable_mosaic.version = 11 : i64} {
  func.func @_actor_kernel(%arg0: i32, %arg1: memref<8x24xf32, #tpu.memory_space<vmem>>, %arg2: memref<24x256xf32, #tpu.memory_space<vmem>>, %arg3: memref<1x256xf32, #tpu.memory_space<vmem>>, %arg4: memref<256x256xf32, #tpu.memory_space<vmem>>, %arg5: memref<1x256xf32, #tpu.memory_space<vmem>>, %arg6: memref<256x128xf32, #tpu.memory_space<vmem>>, %arg7: memref<1x128xf32, #tpu.memory_space<vmem>>, %arg8: memref<1x128xf32, #tpu.memory_space<vmem>>, %arg9: memref<1x128xf32, #tpu.memory_space<vmem>>, %arg10: memref<8x128xf32, #tpu.memory_space<vmem>>) attributes {dimension_semantics = [#tpu.dimension_semantics<parallel>], iteration_bounds = array<i64: 1>, scalar_prefetch = 0 : i64, scratch_operands = 0 : i64, tpu.core_type = #tpu.core_type<tc>, window_params = [{transform_indices = @transform_0, window_bounds = array<i64: 8, 24>}, {pipeline_mode = #tpu.pipeline_mode<synchronous>, transform_indices = @transform_1, window_bounds = array<i64: 24, 256>}, {pipeline_mode = #tpu.pipeline_mode<synchronous>, transform_indices = @transform_2, window_bounds = array<i64: 1, 256>}, {pipeline_mode = #tpu.pipeline_mode<synchronous>, transform_indices = @transform_3, window_bounds = array<i64: 256, 256>}, {pipeline_mode = #tpu.pipeline_mode<synchronous>, transform_indices = @transform_4, window_bounds = array<i64: 1, 256>}, {pipeline_mode = #tpu.pipeline_mode<synchronous>, transform_indices = @transform_5, window_bounds = array<i64: 256, 128>}, {pipeline_mode = #tpu.pipeline_mode<synchronous>, transform_indices = @transform_6, window_bounds = array<i64: 1, 128>}, {pipeline_mode = #tpu.pipeline_mode<synchronous>, transform_indices = @transform_7, window_bounds = array<i64: 1, 128>}, {pipeline_mode = #tpu.pipeline_mode<synchronous>, transform_indices = @transform_8, window_bounds = array<i64: 1, 128>}, {transform_indices = @transform_9, window_bounds = array<i64: 8, 128>}]} {
    %c0 = arith.constant 0 : index
    %c0_0 = arith.constant 0 : index
    %0 = vector.load %arg1[%c0, %c0_0] : memref<8x24xf32, #tpu.memory_space<vmem>>, vector<8x24xf32>
    %c0_1 = arith.constant 0 : index
    %c0_2 = arith.constant 0 : index
    %1 = vector.load %arg2[%c0_1, %c0_2] : memref<24x256xf32, #tpu.memory_space<vmem>>, vector<24x256xf32>
    %cst = arith.constant dense<0.000000e+00> : vector<8x256xf32>
    %2 = tpu.matmul %0, %1, %cst {dimension_numbers = #tpu.dot_dimension_numbers<[1], [0], [0], [1], [0, 0, 1, 1], [], []>} : vector<8x24xf32>, vector<24x256xf32>, vector<8x256xf32> -> vector<8x256xf32>
    %c0_3 = arith.constant 0 : index
    %c0_4 = arith.constant 0 : index
    %3 = vector.load %arg3[%c0_3, %c0_4] : memref<1x256xf32, #tpu.memory_space<vmem>>, vector<1x256xf32>
    %4 = vector.broadcast %3 : vector<1x256xf32> to vector<8x256xf32>
    %5 = arith.addf %2, %4 : vector<8x256xf32>
    %cst_5 = arith.constant 0.000000e+00 : f32
    %6 = vector.broadcast %cst_5 : f32 to vector<8x256xf32>
    %7 = arith.maximumf %5, %6 : vector<8x256xf32>
    %c0_6 = arith.constant 0 : index
    %c0_7 = arith.constant 0 : index
    %8 = vector.load %arg4[%c0_6, %c0_7] : memref<256x256xf32, #tpu.memory_space<vmem>>, vector<256x256xf32>
    %cst_8 = arith.constant dense<0.000000e+00> : vector<8x256xf32>
    %9 = tpu.matmul %7, %8, %cst_8 {dimension_numbers = #tpu.dot_dimension_numbers<[1], [0], [0], [1], [0, 0, 1, 1], [], []>} : vector<8x256xf32>, vector<256x256xf32>, vector<8x256xf32> -> vector<8x256xf32>
    %c0_9 = arith.constant 0 : index
    %c0_10 = arith.constant 0 : index
    %10 = vector.load %arg5[%c0_9, %c0_10] : memref<1x256xf32, #tpu.memory_space<vmem>>, vector<1x256xf32>
    %11 = vector.broadcast %10 : vector<1x256xf32> to vector<8x256xf32>
    %12 = arith.addf %9, %11 : vector<8x256xf32>
    %cst_11 = arith.constant 0.000000e+00 : f32
    %13 = vector.broadcast %cst_11 : f32 to vector<8x256xf32>
    %14 = arith.maximumf %12, %13 : vector<8x256xf32>
    %c0_12 = arith.constant 0 : index
    %c0_13 = arith.constant 0 : index
    %15 = vector.load %arg6[%c0_12, %c0_13] : memref<256x128xf32, #tpu.memory_space<vmem>>, vector<256x128xf32>
    %cst_14 = arith.constant dense<0.000000e+00> : vector<8x128xf32>
    %16 = tpu.matmul %14, %15, %cst_14 {dimension_numbers = #tpu.dot_dimension_numbers<[1], [0], [0], [1], [0, 0, 1, 1], [], []>} : vector<8x256xf32>, vector<256x128xf32>, vector<8x128xf32> -> vector<8x128xf32>
    %c0_15 = arith.constant 0 : index
    %c0_16 = arith.constant 0 : index
    %17 = vector.load %arg7[%c0_15, %c0_16] : memref<1x128xf32, #tpu.memory_space<vmem>>, vector<1x128xf32>
    %18 = vector.broadcast %17 : vector<1x128xf32> to vector<8x128xf32>
    %19 = arith.addf %16, %18 : vector<8x128xf32>
    %c0_17 = arith.constant 0 : index
    %c0_18 = arith.constant 0 : index
    %20 = vector.load %arg8[%c0_17, %c0_18] : memref<1x128xf32, #tpu.memory_space<vmem>>, vector<1x128xf32>
    %c0_19 = arith.constant 0 : index
    %c0_20 = arith.constant 0 : index
    %21 = vector.load %arg9[%c0_19, %c0_20] : memref<1x128xf32, #tpu.memory_space<vmem>>, vector<1x128xf32>
    %22 = vector.broadcast %20 : vector<1x128xf32> to vector<8x128xf32>
    %23 = arith.maximumf %22, %19 : vector<8x128xf32>
    %24 = vector.broadcast %21 : vector<1x128xf32> to vector<8x128xf32>
    %25 = arith.minimumf %24, %23 : vector<8x128xf32>
    %c0_21 = arith.constant 0 : index
    %c0_22 = arith.constant 0 : index
    %26 = vector.load %arg10[%c0_21, %c0_22] : memref<8x128xf32, #tpu.memory_space<vmem>>, vector<8x128xf32>
    tpu.vector_store %arg10[%c0_21, %c0_22], %25 {strides = array<i32>} : memref<8x128xf32, #tpu.memory_space<vmem>>, vector<8x128xf32>,
    return
  }
  func.func @transform_0(%arg0: i32) -> (i32, i32) {
    %c0_i32 = arith.constant 0 : i32
    %c0_i32_0 = arith.constant 0 : i32
    return %arg0, %c0_i32 : i32, i32
  }
  func.func @transform_1(%arg0: i32) -> (i32, i32) {
    %c0_i32 = arith.constant 0 : i32
    %c0_i32_0 = arith.constant 0 : i32
    %c0_i32_1 = arith.constant 0 : i32
    return %c0_i32, %c0_i32_0 : i32, i32
  }
  func.func @transform_2(%arg0: i32) -> (i32, i32) {
    %c0_i32 = arith.constant 0 : i32
    %c0_i32_0 = arith.constant 0 : i32
    %c0_i32_1 = arith.constant 0 : i32
    return %c0_i32, %c0_i32_0 : i32, i32
  }
  func.func @transform_3(%arg0: i32) -> (i32, i32) {
    %c0_i32 = arith.constant 0 : i32
    %c0_i32_0 = arith.constant 0 : i32
    %c0_i32_1 = arith.constant 0 : i32
    return %c0_i32, %c0_i32_0 : i32, i32
  }
  func.func @transform_4(%arg0: i32) -> (i32, i32) {
    %c0_i32 = arith.constant 0 : i32
    %c0_i32_0 = arith.constant 0 : i32
    %c0_i32_1 = arith.constant 0 : i32
    return %c0_i32, %c0_i32_0 : i32, i32
  }
  func.func @transform_5(%arg0: i32) -> (i32, i32) {
    %c0_i32 = arith.constant 0 : i32
    %c0_i32_0 = arith.constant 0 : i32
    %c0_i32_1 = arith.constant 0 : i32
    return %c0_i32, %c0_i32_0 : i32, i32
  }
  func.func @transform_6(%arg0: i32) -> (i32, i32) {
    %c0_i32 = arith.constant 0 : i32
    %c0_i32_0 = arith.constant 0 : i32
    %c0_i32_1 = arith.constant 0 : i32
    return %c0_i32, %c0_i32_0 : i32, i32
  }
  func.func @transform_7(%arg0: i32) -> (i32, i32) {
    %c0_i32 = arith.constant 0 : i32
    %c0_i32_0 = arith.constant 0 : i32
    %c0_i32_1 = arith.constant 0 : i32
    return %c0_i32, %c0_i32_0 : i32, i32
  }
  func.func @transform_8(%arg0: i32) -> (i32, i32) {
    %c0_i32 = arith.constant 0 : i32
    %c0_i32_0 = arith.constant 0 : i32
    %c0_i32_1 = arith.constant 0 : i32
    return %c0_i32, %c0_i32_0 : i32, i32
  }
  func.func @transform_9(%arg0: i32) -> (i32, i32) {
    %c0_i32 = arith.constant 0 : i32
    %c0_i32_0 = arith.constant 0 : i32
    return %arg0, %c0_i32 : i32, i32
  }
}

</mosaic_0001>

<llo_original>
// kernel: tpu_custom_call.1
$region0: #{tpu_custom_call.1}
  #allocation0 [shape = 'u32[]', space=smem, size = 0x4, offset = 0x4, fixed_abs, tag = 'smem constant byte address 0x4 - core index']
  #allocation1 [shape = 'u32[144,128]{1,0:T(1,128)}', space=vmem, size = 0x12000, scoped, tag = 'internal scratch']
  %s0 = inlined_call_operand.hbm [shape: f32[8,24], index: 0, kind: input, shape index: {}]
  %s1 = inlined_call_operand.hbm [shape: f32[24,256], index: 1, kind: input, shape index: {}]
  %s2 = inlined_call_operand.vmem [shape: f32[1,256], index: 2, kind: input, shape index: {}]
  %s3 = inlined_call_operand.hbm [shape: f32[256,256], index: 3, kind: input, shape index: {}]
  %s4 = inlined_call_operand.vmem [shape: f32[1,256], index: 4, kind: input, shape index: {}]
  %s5 = inlined_call_operand.hbm [shape: f32[256,128], index: 5, kind: input, shape index: {}]
  %s6 = inlined_call_operand.vmem [shape: f32[1,128], index: 6, kind: input, shape index: {}]
  %s7 = inlined_call_operand.vmem [shape: f32[1,128], index: 7, kind: input, shape index: {}]
  %s8 = inlined_call_operand.vmem [shape: f32[1,128], index: 8, kind: input, shape index: {}]
  %s9 = inlined_call_operand.hbm [shape: f32[8,128], index: 9, kind: output, shape index: {}]
  %s10 = sld [smem:[#allocation0]]
  $region62: #{tpu_custom_call.1} parent=0
    _
  %s12 = ssub.s32 1, %s10
  %s13 = scalar_select 0, %s12, %s10
  $region1: #{tpu_custom_call.1} parent=0
    #allocation2 [shape = 'u8[4096]{0}', space=vmem, size = 0x1000, scoped, tag = 'input window, operand 0, single buffered']
    #allocation3 [shape = 's32[1]{0}', space=sflag, size = 0x4, scoped, tag = 'scoped memory for tpu_custom_call.1']
    #allocation4 [shape = 's32[1]{0}', space=sflag, size = 0x4, scoped, tag = 'scoped memory for tpu_custom_call.1']
    #allocation5 [shape = 'u8[24576]{0}', space=vmem, size = 0x6000, scoped, tag = 'input window, operand 1, single buffered']
    #allocation6 [shape = 's32[1]{0}', space=sflag, size = 0x4, scoped, tag = 'scoped memory for tpu_custom_call.1']
    #allocation7 [shape = 'u8[262144]{0}', space=vmem, size = 0x40000, scoped, tag = 'input window, operand 3, single buffered']
    #allocation8 [shape = 'u8[131072]{0}', space=vmem, size = 0x20000, scoped, tag = 'input window, operand 5, single buffered']
    #allocation9 [shape = 's32[1]{0}', space=sflag, size = 0x4, scoped, tag = 'scoped memory for tpu_custom_call.1']
    #allocation10 [shape = 'u8[4096]{0}', space=vmem, size = 0x1000, scoped, tag = 'output window, operand 0, single buffered']
    %14 = vsyncpa [#allocation3], 0
    %15 = vsyncpa [#allocation6], 0
    %16 = vsyncpa [#allocation9], 0
    %17 = vsyncpa [#allocation4], 0
    // Predicated region
    $region2: #{tpu_custom_call.1} parent=1 // pred_check
      _
    $region3: #{tpu_custom_call.1} parent=1 // pred_check_branch
      %19 = sbr.rel (0) target = $region5
    $region4: #{tpu_custom_call.1} parent=1 // pred_region
      %s21 = ssub.s32 128, 128
      %22 = vsyncadd [#allocation3], %s21
      %s24 = sshll.u32 [#allocation2], 4
      %s25 = int_to_ptr.vmem [resolvable:$true] %s24
      %27 = dma.hbm_to_vmem [thread:$0]  %s0, 128, %s25, [#allocation3]
    $region5: #{tpu_custom_call.1} parent=1 // pred_fallthru
      _
    // Predicated region
    $region6: #{tpu_custom_call.1} parent=1 // pred_check
      _
    $region7: #{tpu_custom_call.1} parent=1 // pred_check_branch
      %29 = sbr.rel (0) target = $region9
    $region8: #{tpu_custom_call.1} parent=1 // pred_region
      %s31 = ssub.s32 768, 768
      %32 = vsyncadd [#allocation6], %s31
      %s33 = sshll.u32 [#allocation5], 4
      %s34 = int_to_ptr.vmem [resolvable:$true] %s33
      %39 = dma.hbm_to_vmem [thread:$0]  %s1, 768, %s34, [#allocation6], 256, 256, 16
    $region9: #{tpu_custom_call.1} parent=1 // pred_fallthru
      _
    // Predicated region
    $region10: #{tpu_custom_call.1} parent=1 // pred_check
      _
    $region11: #{tpu_custom_call.1} parent=1 // pred_check_branch
      %41 = sbr.rel (0) target = $region13
    $region12: #{tpu_custom_call.1} parent=1 // pred_region
      _
    $region13: #{tpu_custom_call.1} parent=1 // pred_fallthru
      _
    // Predicated region
    $region14: #{tpu_custom_call.1} parent=1 // pred_check
      _
    $region15: #{tpu_custom_call.1} parent=1 // pred_check_branch
      %43 = sbr.rel (0) target = $region17
    $region16: #{tpu_custom_call.1} parent=1 // pred_region
      %s45 = ssub.s32 8192, 8192
      %46 = vsyncadd [#allocation6], %s45
      %s47 = sshll.u32 [#allocation7], 4
      %s48 = int_to_ptr.vmem [resolvable:$true] %s47
      %53 = dma.hbm_to_vmem [thread:$0]  %s3, 8192, %s48, [#allocation6], 256, 256, 16
    $region17: #{tpu_custom_call.1} parent=1 // pred_fallthru
      _
    // Predicated region
    $region18: #{tpu_custom_call.1} parent=1 // pred_check
      _
    $region19: #{tpu_custom_call.1} parent=1 // pred_check_branch
      %55 = sbr.rel (0) target = $region21
    $region20: #{tpu_custom_call.1} parent=1 // pred_region
      _
    $region21: #{tpu_custom_call.1} parent=1 // pred_fallthru
      _
    // Predicated region
    $region22: #{tpu_custom_call.1} parent=1 // pred_check
      _
    $region23: #{tpu_custom_call.1} parent=1 // pred_check_branch
      %57 = sbr.rel (0) target = $region25
    $region24: #{tpu_custom_call.1} parent=1 // pred_region
      %s59 = ssub.s32 4096, 4096
      %60 = vsyncadd [#allocation9], %s59
      %s61 = sshll.u32 [#allocation8], 4
      %s62 = int_to_ptr.vmem [resolvable:$true] %s61
      %67 = dma.hbm_to_vmem [thread:$0]  %s5, 4096, %s62, [#allocation9], 128, 128, 8
    $region25: #{tpu_custom_call.1} parent=1 // pred_fallthru
      _
    // Predicated region
    $region26: #{tpu_custom_call.1} parent=1 // pred_check
      _
    $region27: #{tpu_custom_call.1} parent=1 // pred_check_branch
      %69 = sbr.rel (0) target = $region29
    $region28: #{tpu_custom_call.1} parent=1 // pred_region
      _
    $region29: #{tpu_custom_call.1} parent=1 // pred_fallthru
      _
    // Predicated region
    $region30: #{tpu_custom_call.1} parent=1 // pred_check
      _
    $region31: #{tpu_custom_call.1} parent=1 // pred_check_branch
      %71 = sbr.rel (0) target = $region33
    $region32: #{tpu_custom_call.1} parent=1 // pred_region
      _
    $region33: #{tpu_custom_call.1} parent=1 // pred_fallthru
      _
    // Predicated region
    $region34: #{tpu_custom_call.1} parent=1 // pred_check
      _
    $region35: #{tpu_custom_call.1} parent=1 // pred_check_branch
      %73 = sbr.rel (0) target = $region37
    $region36: #{tpu_custom_call.1} parent=1 // pred_region
      _
    $region37: #{tpu_custom_call.1} parent=1 // pred_fallthru
      _
    // Predicated region
    $region38: #{tpu_custom_call.1} parent=1 // pred_check
      _
    $region39: #{tpu_custom_call.1} parent=1 // pred_check_branch
      %75 = sbr.rel (0) target = $region41
    $region40: #{tpu_custom_call.1} parent=1 // pred_region
      %76 = dma.done [#allocation3], 128
    $region41: #{tpu_custom_call.1} parent=1 // pred_fallthru
      _
    // Predicated region
    $region42: #{tpu_custom_call.1} parent=1 // pred_check
      _
    $region43: #{tpu_custom_call.1} parent=1 // pred_check_branch
      %78 = sbr.rel (0) target = $region45
    $region44: #{tpu_custom_call.1} parent=1 // pred_region
      %79 = dma.done [#allocation6], 768
    $region45: #{tpu_custom_call.1} parent=1 // pred_fallthru
      _
    // Predicated region
    $region46: #{tpu_custom_call.1} parent=1 // pred_check
      _
    $region47: #{tpu_custom_call.1} parent=1 // pred_check_branch
      %81 = sbr.rel (0) target = $region49
    $region48: #{tpu_custom_call.1} parent=1 // pred_region
      %82 = dma.done [#allocation6], 8192
    $region49: #{tpu_custom_call.1} parent=1 // pred_fallthru
      _
    // Predicated region
    $region50: #{tpu_custom_call.1} parent=1 // pred_check
      _
    $region51: #{tpu_custom_call.1} parent=1 // pred_check_branch
      %84 = sbr.rel (0) target = $region53
    $region52: #{tpu_custom_call.1} parent=1 // pred_region
      %85 = dma.done [#allocation9], 4096
    $region53: #{tpu_custom_call.1} parent=1 // pred_fallthru
      _
    %v86 = vld [vmem:[#allocation2] sm:$0xff]
    %v87 = vld [vmem:[#allocation5] sm:$0xff]
    %v88 = vld [vmem:[#allocation5 + $0x8] sm:$0xff]
    %v89 = vld [vmem:[#allocation5 + $0x10] sm:$0xff]
    %v90 = vld [vmem:[#allocation5 + $0x18] sm:$0xff]
    %v91 = vld [vmem:[#allocation5 + $0x20] sm:$0xff]
    %v92 = vld [vmem:[#allocation5 + $0x28] sm:$0xff]
    %v93 = vld [vmem:[%s2] sm:$0x3]
    %v95 = vlaneseq
    %v96 = vshrl.u32 %v95, 7
    %v97 = vsub.s32 0, %v96
    %v98 = vrot.slane %v93, %v97
    %v99 = vlaneseq
    %v100 = vshrl.u32 %v99, 7
    %v101 = vsub.s32 1, %v100
    %v102 = vrot.slane %v93, %v101
    %vm105 = vcmask 195584
    %v107 = vsel %vm105, %v86, 0
    %109 = vmatprep.subr.mxu0 0.0
    %110 = vmatpush1.msra.mxu0 0.0
    %111 = vmatprep.subr.mxu0 0.0
    %112 = vmatpush1.msra.mxu0 0.0
    %113 = vmatprep.subr.mxu0 0.0
    %114 = vmatpush1.msra.mxu0 0.0
    %115 = vmatprep.subr.mxu0 0.0
    %116 = vmatpush1.msra.mxu0 0.0
    %117 = vmatprep.subr.mxu0 0.0
    %118 = vmatpush1.msra.mxu0 0.0
    %119 = vmatprep.subr.mxu0 0.0
    %120 = vmatpush1.msra.mxu0 0.0
    %121 = vmatprep.subr.mxu0 0.0
    %122 = vmatpush1.msra.mxu0 0.0
    %123 = vmatprep.subr.mxu0 0.0
    %124 = vmatpush1.msra.mxu0 0.0
    %125 = vmatprep.subr.mxu0 0.0
    %126 = vmatpush1.msra.mxu0 0.0
    %127 = vmatprep.subr.mxu0 0.0
    %128 = vmatpush1.msra.mxu0 0.0
    %129 = vmatprep.subr.mxu0 0.0
    %130 = vmatpush1.msra.mxu0 0.0
    %131 = vmatprep.subr.mxu0 0.0
    %132 = vmatpush1.msra.mxu0 0.0
    %133 = vmatprep.subr.mxu0 0.0
    %134 = vmatpush1.msra.mxu0 0.0
    %135 = vmatprep.subr.mxu0 %v92
    %136 = vmatpush1.msra.mxu0 %v91
    %137 = vmatprep.subr.mxu0 %v90
    %138 = vmatpush1.msra.mxu0 %v89
    %139 = vmatprep.subr.mxu0 %v88
    %140 = vmatpush1.msra.mxu0 %v87
    %141 = vmatprep.subr.mxu0 0.0
    %142 = vmatpush2.msra.mxu0 0.0
    %143 = vmatprep.subr.mxu0 0.0
    %144 = vmatpush2.msra.mxu0 0.0
    %145 = vmatprep.subr.mxu0 0.0
    %146 = vmatpush2.msra.mxu0 0.0
    %147 = vmatprep.subr.mxu0 0.0
    %148 = vmatpush2.msra.mxu0 0.0
    %149 = vmatprep.subr.mxu0 0.0
    %150 = vmatpush2.msra.mxu0 0.0
    %151 = vmatprep.subr.mxu0 0.0
    %152 = vmatpush2.msra.mxu0 0.0
    %153 = vmatprep.subr.mxu0 0.0
    %154 = vmatpush2.msra.mxu0 0.0
    %155 = vmatprep.subr.mxu0 0.0
    %156 = vmatpush2.msra.mxu0 0.0
    %157 = vmatprep.subr.mxu0 0.0
    %158 = vmatpush2.msra.mxu0 0.0
    %159 = vmatprep.subr.mxu0 0.0
    %160 = vmatpush2.msra.mxu0 0.0
    %161 = vmatprep.subr.mxu0 0.0
    %162 = vmatpush2.msra.mxu0 0.0
    %163 = vmatprep.subr.mxu0 0.0
    %164 = vmatpush2.msra.mxu0 0.0
    %165 = vmatprep.subr.mxu0 0.0
    %166 = vmatpush2.msra.mxu0 0.0
    %167 = vmatprep.subr.mxu0 0.0
    %168 = vmatpush2.msra.mxu0 0.0
    %169 = vmatprep.subr.mxu0 0.0
    %170 = vmatpush2.msra.mxu0 0.0
    %171 = vmatprep.subr.mxu0 0.0
    %172 = vmatpush2.msra.mxu0 0.0
    %173 = vmatprep.mubr.f32.mxu0 0.0
    %174 = vmatmul.mubr.f32.gmra.mxu0 %v107
    %v175 = vpop.f32.mrf.mxu0
    %v176 = vadd.f32 %v98, %v175
    %v177 = vpop.f32.mrf.mxu0
    %v178 = vadd.f32 %v102, %v177
    %179 = vdwg.mxu0
    %v180 = vmax.f32 %v176, 0.0
    %v181 = vmax.f32 %v178, 0.0
    %v182 = vld [vmem:[#allocation7] sm:$0xff]
    %v183 = vld [vmem:[#allocation7 + $0x8] sm:$0xff]
    %v184 = vld [vmem:[#allocation7 + $0x10] sm:$0xff]
    %v185 = vld [vmem:[#allocation7 + $0x18] sm:$0xff]
    %v186 = vld [vmem:[#allocation7 + $0x20] sm:$0xff]
    %v187 = vld [vmem:[#allocation7 + $0x28] sm:$0xff]
    %v188 = vld [vmem:[#allocation7 + $0x30] sm:$0xff]
    %v189 = vld [vmem:[#allocation7 + $0x38] sm:$0xff]
    %v190 = vld [vmem:[#allocation7 + $0x40] sm:$0xff]
    %v191 = vld [vmem:[#allocation7 + $0x48] sm:$0xff]
    %v192 = vld [vmem:[#allocation7 + $0x50] sm:$0xff]
    %v193 = vld [vmem:[#allocation7 + $0x58] sm:$0xff]
    %v194 = vld [vmem:[#allocation7 + $0x60] sm:$0xff]
    %v195 = vld [vmem:[#allocation7 + $0x68] sm:$0xff]
    %v196 = vld [vmem:[#allocation7 + $0x70] sm:$0xff]
    %v197 = vld [vmem:[#allocation7 + $0x78] sm:$0xff]
    %v198 = vld [vmem:[#allocation7 + $0x80] sm:$0xff]
    %v199 = vld [vmem:[#allocation7 + $0x88] sm:$0xff]
    %v200 = vld [vmem:[#allocation7 + $0x90] sm:$0xff]
    %v201 = vld [vmem:[#allocation7 + $0x98] sm:$0xff]
    %v202 = vld [vmem:[#allocation7 + $0xa0] sm:$0xff]
    %v203 = vld [vmem:[#allocation7 + $0xa8] sm:$0xff]
    %v204 = vld [vmem:[#allocation7 + $0xb0] sm:$0xff]
    %v205 = vld [vmem:[#allocation7 + $0xb8] sm:$0xff]
    %v206 = vld [vmem:[#allocation7 + $0xc0] sm:$0xff]
    %v207 = vld [vmem:[#allocation7 + $0xc8] sm:$0xff]
    %v208 = vld [vmem:[#allocation7 + $0xd0] sm:$0xff]
    %v209 = vld [vmem:[#allocation7 + $0xd8] sm:$0xff]
    %v210 = vld [vmem:[#allocation7 + $0xe0] sm:$0xff]
    %v211 = vld [vmem:[#allocation7 + $0xe8] sm:$0xff]
    %v212 = vld [vmem:[#allocation7 + $0xf0] sm:$0xff]
    %v213 = vld [vmem:[#allocation7 + $0xf8] sm:$0xff]
    %v214 = vld [vmem:[#allocation7 + $0x100] sm:$0xff]
    %v215 = vld [vmem:[#allocation7 + $0x108] sm:$0xff]
    %v216 = vld [vmem:[#allocation7 + $0x110] sm:$0xff]
    %v217 = vld [vmem:[#allocation7 + $0x118] sm:$0xff]
    %v218 = vld [vmem:[#allocation7 + $0x120] sm:$0xff]
    %v219 = vld [vmem:[#allocation7 + $0x128] sm:$0xff]
    %v220 = vld [vmem:[#allocation7 + $0x130] sm:$0xff]
    %v221 = vld [vmem:[#allocation7 + $0x138] sm:$0xff]
    %v222 = vld [vmem:[#allocation7 + $0x140] sm:$0xff]
    %v223 = vld [vmem:[#allocation7 + $0x148] sm:$0xff]
    %v224 = vld [vmem:[#allocation7 + $0x150] sm:$0xff]
    %v225 = vld [vmem:[#allocation7 + $0x158] sm:$0xff]
    %v226 = vld [vmem:[#allocation7 + $0x160] sm:$0xff]
    %v227 = vld [vmem:[#allocation7 + $0x168] sm:$0xff]
    %v228 = vld [vmem:[#allocation7 + $0x170] sm:$0xff]
    %v229 = vld [vmem:[#allocation7 + $0x178] sm:$0xff]
    %v230 = vld [vmem:[#allocation7 + $0x180] sm:$0xff]
    %v231 = vld [vmem:[#allocation7 + $0x188] sm:$0xff]
    %v232 = vld [vmem:[#allocation7 + $0x190] sm:$0xff]
    %v233 = vld [vmem:[#allocation7 + $0x198] sm:$0xff]
    %v234 = vld [vmem:[#allocation7 + $0x1a0] sm:$0xff]
    %v235 = vld [vmem:[#allocation7 + $0x1a8] sm:$0xff]
    %v236 = vld [vmem:[#allocation7 + $0x1b0] sm:$0xff]
    %v237 = vld [vmem:[#allocation7 + $0x1b8] sm:$0xff]
    %v238 = vld [vmem:[#allocation7 + $0x1c0] sm:$0xff]
    %v239 = vld [vmem:[#allocation7 + $0x1c8] sm:$0xff]
    %v240 = vld [vmem:[#allocation7 + $0x1d0] sm:$0xff]
    %v241 = vld [vmem:[#allocation7 + $0x1d8] sm:$0xff]
    %v242 = vld [vmem:[#allocation7 + $0x1e0] sm:$0xff]
    %v243 = vld [vmem:[#allocation7 + $0x1e8] sm:$0xff]
    %v244 = vld [vmem:[#allocation7 + $0x1f0] sm:$0xff]
    %v245 = vld [vmem:[#allocation7 + $0x1f8] sm:$0xff]
    %v246 = vld [vmem:[%s4] sm:$0x3]
    %v248 = vlaneseq
    %v249 = vshrl.u32 %v248, 7
    %v250 = vsub.s32 0, %v249
    %v251 = vrot.slane %v246, %v250
    %v252 = vlaneseq
    %v253 = vshrl.u32 %v252, 7
    %v254 = vsub.s32 1, %v253
    %v255 = vrot.slane %v246, %v254
    %258 = vmatprep.subr.mxu0 %v213
    %259 = vmatpush1.msra.mxu0 %v212
    %260 = vmatprep.subr.mxu0 %v211
    %261 = vmatpush1.msra.mxu0 %v210
    %262 = vmatprep.subr.mxu0 %v209
    %263 = vmatpush1.msra.mxu0 %v208
    %264 = vmatprep.subr.mxu0 %v207
    %265 = vmatpush1.msra.mxu0 %v206
    %266 = vmatprep.subr.mxu0 %v205
    %267 = vmatpush1.msra.mxu0 %v204
    %268 = vmatprep.subr.mxu0 %v203
    %269 = vmatpush1.msra.mxu0 %v202
    %270 = vmatprep.subr.mxu0 %v201
    %271 = vmatpush1.msra.mxu0 %v200
    %272 = vmatprep.subr.mxu0 %v199
    %273 = vmatpush1.msra.mxu0 %v198
    %274 = vmatprep.subr.mxu0 %v197
    %275 = vmatpush1.msra.mxu0 %v196
    %276 = vmatprep.subr.mxu0 %v195
    %277 = vmatpush1.msra.mxu0 %v194
    %278 = vmatprep.subr.mxu0 %v193
    %279 = vmatpush1.msra.mxu0 %v192
    %280 = vmatprep.subr.mxu0 %v191
    %281 = vmatpush1.msra.mxu0 %v190
    %282 = vmatprep.subr.mxu0 %v189
    %283 = vmatpush1.msra.mxu0 %v188
    %284 = vmatprep.subr.mxu0 %v187
    %285 = vmatpush1.msra.mxu0 %v186
    %286 = vmatprep.subr.mxu0 %v185
    %287 = vmatpush1.msra.mxu0 %v184
    %288 = vmatprep.subr.mxu0 %v183
    %289 = vmatpush1.msra.mxu0 %v182
    %290 = vmatprep.subr.mxu0 %v245
    %291 = vmatpush2.msra.mxu0 %v244
    %292 = vmatprep.subr.mxu0 %v243
    %293 = vmatpush2.msra.mxu0 %v242
    %294 = vmatprep.subr.mxu0 %v241
    %295 = vmatpush2.msra.mxu0 %v240
    %296 = vmatprep.subr.mxu0 %v239
    %297 = vmatpush2.msra.mxu0 %v238
    %298 = vmatprep.subr.mxu0 %v237
    %299 = vmatpush2.msra.mxu0 %v236
    %300 = vmatprep.subr.mxu0 %v235
    %301 = vmatpush2.msra.mxu0 %v234
    %302 = vmatprep.subr.mxu0 %v233
    %303 = vmatpush2.msra.mxu0 %v232
    %304 = vmatprep.subr.mxu0 %v231
    %305 = vmatpush2.msra.mxu0 %v230
    %306 = vmatprep.subr.mxu0 %v229
    %307 = vmatpush2.msra.mxu0 %v228
    %308 = vmatprep.subr.mxu0 %v227
    %309 = vmatpush2.msra.mxu0 %v226
    %310 = vmatprep.subr.mxu0 %v225
    %311 = vmatpush2.msra.mxu0 %v224
    %312 = vmatprep.subr.mxu0 %v223
    %313 = vmatpush2.msra.mxu0 %v222
    %314 = vmatprep.subr.mxu0 %v221
    %315 = vmatpush2.msra.mxu0 %v220
    %316 = vmatprep.subr.mxu0 %v219
    %317 = vmatpush2.msra.mxu0 %v218
    %318 = vmatprep.subr.mxu0 %v217
    %319 = vmatpush2.msra.mxu0 %v216
    %320 = vmatprep.subr.mxu0 %v215
    %321 = vmatpush2.msra.mxu0 %v214
    %322 = vmatprep.mubr.f32.mxu0 %v181
    %323 = vmatmul.mubr.f32.gmra.mxu0 %v180
    %v324 = vpop.f32.mrf.mxu0
    %v325 = vadd.f32 %v251, %v324
    %v326 = vpop.f32.mrf.mxu0
    %v327 = vadd.f32 %v255, %v326
    %328 = vdwg.mxu0
    %v329 = vmax.f32 %v325, 0.0
    %v330 = vmax.f32 %v327, 0.0
    %v331 = vld [vmem:[#allocation8] sm:$0xff]
    %v332 = vld [vmem:[#allocation8 + $0x8] sm:$0xff]
    %v333 = vld [vmem:[#allocation8 + $0x10] sm:$0xff]
    %v334 = vld [vmem:[#allocation8 + $0x18] sm:$0xff]
    %v335 = vld [vmem:[#allocation8 + $0x20] sm:$0xff]
    %v336 = vld [vmem:[#allocation8 + $0x28] sm:$0xff]
    %v337 = vld [vmem:[#allocation8 + $0x30] sm:$0xff]
    %v338 = vld [vmem:[#allocation8 + $0x38] sm:$0xff]
    %v339 = vld [vmem:[#allocation8 + $0x40] sm:$0xff]
    %v340 = vld [vmem:[#allocation8 + $0x48] sm:$0xff]
    %v341 = vld [vmem:[#allocation8 + $0x50] sm:$0xff]
    %v342 = vld [vmem:[#allocation8 + $0x58] sm:$0xff]
    %v343 = vld [vmem:[#allocation8 + $0x60] sm:$0xff]
    %v344 = vld [vmem:[#allocation8 + $0x68] sm:$0xff]
    %v345 = vld [vmem:[#allocation8 + $0x70] sm:$0xff]
    %v346 = vld [vmem:[#allocation8 + $0x78] sm:$0xff]
    %v347 = vld [vmem:[#allocation8 + $0x80] sm:$0xff]
    %v348 = vld [vmem:[#allocation8 + $0x88] sm:$0xff]
    %v349 = vld [vmem:[#allocation8 + $0x90] sm:$0xff]
    %v350 = vld [vmem:[#allocation8 + $0x98] sm:$0xff]
    %v351 = vld [vmem:[#allocation8 + $0xa0] sm:$0xff]
    %v352 = vld [vmem:[#allocation8 + $0xa8] sm:$0xff]
    %v353 = vld [vmem:[#allocation8 + $0xb0] sm:$0xff]
    %v354 = vld [vmem:[#allocation8 + $0xb8] sm:$0xff]
    %v355 = vld [vmem:[#allocation8 + $0xc0] sm:$0xff]
    %v356 = vld [vmem:[#allocation8 + $0xc8] sm:$0xff]
    %v357 = vld [vmem:[#allocation8 + $0xd0] sm:$0xff]
    %v358 = vld [vmem:[#allocation8 + $0xd8] sm:$0xff]
    %v359 = vld [vmem:[#allocation8 + $0xe0] sm:$0xff]
    %v360 = vld [vmem:[#allocation8 + $0xe8] sm:$0xff]
    %v361 = vld [vmem:[#allocation8 + $0xf0] sm:$0xff]
    %v362 = vld [vmem:[#allocation8 + $0xf8] sm:$0xff]
    %v363 = vld [vmem:[%s6] sm:$0x1]
    %v365 = vlaneseq
    %v366 = vshrl.u32 %v365, 7
    %v367 = vsub.s32 0, %v366
    %v368 = vrot.slane %v363, %v367
    %370 = vmatprep.subr.mxu0 0.0
    %371 = vmatpush1.msra.mxu0 %v346
    %372 = vmatprep.subr.mxu0 0.0
    %373 = vmatpush1.msra.mxu0 %v345
    %374 = vmatprep.subr.mxu0 0.0
    %375 = vmatpush1.msra.mxu0 %v344
    %376 = vmatprep.subr.mxu0 0.0
    %377 = vmatpush1.msra.mxu0 %v343
    %378 = vmatprep.subr.mxu0 0.0
    %379 = vmatpush1.msra.mxu0 %v342
    %380 = vmatprep.subr.mxu0 0.0
    %381 = vmatpush1.msra.mxu0 %v341
    %382 = vmatprep.subr.mxu0 0.0
    %383 = vmatpush1.msra.mxu0 %v340
    %384 = vmatprep.subr.mxu0 0.0
    %385 = vmatpush1.msra.mxu0 %v339
    %386 = vmatprep.subr.mxu0 0.0
    %387 = vmatpush1.msra.mxu0 %v338
    %388 = vmatprep.subr.mxu0 0.0
    %389 = vmatpush1.msra.mxu0 %v337
    %390 = vmatprep.subr.mxu0 0.0
    %391 = vmatpush1.msra.mxu0 %v336
    %392 = vmatprep.subr.mxu0 0.0
    %393 = vmatpush1.msra.mxu0 %v335
    %394 = vmatprep.subr.mxu0 0.0
    %395 = vmatpush1.msra.mxu0 %v334
    %396 = vmatprep.subr.mxu0 0.0
    %397 = vmatpush1.msra.mxu0 %v333
    %398 = vmatprep.subr.mxu0 0.0
    %399 = vmatpush1.msra.mxu0 %v332
    %400 = vmatprep.subr.mxu0 0.0
    %401 = vmatpush1.msra.mxu0 %v331
    %402 = vmatprep.subr.mxu0 0.0
    %403 = vmatpush2.msra.mxu0 %v362
    %404 = vmatprep.subr.mxu0 0.0
    %405 = vmatpush2.msra.mxu0 %v361
    %406 = vmatprep.subr.mxu0 0.0
    %407 = vmatpush2.msra.mxu0 %v360
    %408 = vmatprep.subr.mxu0 0.0
    %409 = vmatpush2.msra.mxu0 %v359
    %410 = vmatprep.subr.mxu0 0.0
    %411 = vmatpush2.msra.mxu0 %v358
    %412 = vmatprep.subr.mxu0 0.0
    %413 = vmatpush2.msra.mxu0 %v357
    %414 = vmatprep.subr.mxu0 0.0
    %415 = vmatpush2.msra.mxu0 %v356
    %416 = vmatprep.subr.mxu0 0.0
    %417 = vmatpush2.msra.mxu0 %v355
    %418 = vmatprep.subr.mxu0 0.0
    %419 = vmatpush2.msra.mxu0 %v354
    %420 = vmatprep.subr.mxu0 0.0
    %421 = vmatpush2.msra.mxu0 %v353
    %422 = vmatprep.subr.mxu0 0.0
    %423 = vmatpush2.msra.mxu0 %v352
    %424 = vmatprep.subr.mxu0 0.0
    %425 = vmatpush2.msra.mxu0 %v351
    %426 = vmatprep.subr.mxu0 0.0
    %427 = vmatpush2.msra.mxu0 %v350
    %428 = vmatprep.subr.mxu0 0.0
    %429 = vmatpush2.msra.mxu0 %v349
    %430 = vmatprep.subr.mxu0 0.0
    %431 = vmatpush2.msra.mxu0 %v348
    %432 = vmatprep.subr.mxu0 0.0
    %433 = vmatpush2.msra.mxu0 %v347
    %434 = vmatprep.mubr.f32.mxu0 %v330
    %435 = vmatmul.mubr.f32.gmra.mxu0 %v329
    %v436 = vpop.f32.mrf.mxu0
    %v437 = vadd.f32 %v368, %v436
    %v438 = vpop.f32.mrf.mxu0
    %439 = vdwg.mxu0
    %v440 = vld [vmem:[%s7] sm:$0x1]
    %v441 = vld [vmem:[%s8] sm:$0x1]
    %v443 = vlaneseq
    %v444 = vshrl.u32 %v443, 7
    %v445 = vsub.s32 0, %v444
    %v446 = vrot.slane %v440, %v445
    %v448 = vmax.f32 %v446, %v437
    %v450 = vlaneseq
    %v451 = vshrl.u32 %v450, 7
    %v452 = vsub.s32 0, %v451
    %v453 = vrot.slane %v441, %v452
    %v455 = vmin.f32 %v453, %v448
    %456 = vst [vmem:[#allocation10] sm:$0xff] %v455
    // Predicated region
    $region54: #{tpu_custom_call.1} parent=1 // pred_check
      _
    $region55: #{tpu_custom_call.1} parent=1 // pred_check_branch
      %458 = sbr.rel (0) target = $region57
    $region56: #{tpu_custom_call.1} parent=1 // pred_region
      %s460 = ssub.s32 128, 128
      %461 = vsyncadd [#allocation4], %s460
      %s463 = sshll.u32 [#allocation10], 4
      %s464 = int_to_ptr.vmem [resolvable:$true] %s463
      %466 = dma.vmem_to_hbm [thread:$0]  %s464, 128, %s9, [#allocation4]
    $region57: #{tpu_custom_call.1} parent=1 // pred_fallthru
      _
    // Predicated region
    $region58: #{tpu_custom_call.1} parent=1 // pred_check
      _
    $region59: #{tpu_custom_call.1} parent=1 // pred_check_branch
      %468 = sbr.rel (0) target = $region61
    $region60: #{tpu_custom_call.1} parent=1 // pred_region
      %469 = dma.done [#allocation4], 128
    $region61: #{tpu_custom_call.1} parent=1 // pred_fallthru
      _
    %470 = vsyncpa [#allocation3], 1
    %471 = vsyncpa [#allocation6], 1
    %472 = vsyncpa [#allocation9], 1
    %473 = vsyncpa [#allocation4], 1

</llo_original>
